<compile_context>
chip_gen: v7x
topology: tpu7x:2x2x1
jax: 0.10.0
libtpu: 0.0.40
codegen_flags: <defaults>
</compile_context>

<pallas_src>
import jax
import jax.numpy as jnp
from jax.experimental import pallas as pl
from jax.experimental.pallas import tpu as pltpu
from functools import partial


def _spatial_gather_kernel(probs_ref, feats_ref, out_ref, e_ref, acc_ref,
                           *, scale, hw_tile):
    # probs_ref: (1, K, HW)     full probs block for this image (resident across cb/hb)
    # feats_ref: (1, TC, THW)   streamed feats tile (compute dtype)
    # out_ref:   (1, TC, K)     context tile (resident across the HW axis)
    # e_ref:     (K, HW)        normalized-softmax cache (compute dtype)
    # acc_ref:   (TC, K)        f32 accumulator
    hb = pl.program_id(2)

    # (Re)build the softmax cache + zero the accumulator on the first HW step
    # of every (image, C-tile).  Rebuilding per C tile keeps the batch and C
    # grid axes free of scratch dependencies -> "parallel"-shardable.
    @pl.when(hb == 0)
    def _():
        p = probs_ref[0].astype(jnp.float32)              # (K, HW), f32 math
        if scale != 1.0:                                  # trace-time specialization
            p = p * scale
        p = p - jnp.max(p, axis=-1, keepdims=True)
        e = jnp.exp(p)
        inv = 1.0 / jnp.sum(e, axis=-1, keepdims=True)    # exact; only K values
        e_ref[...] = (e * inv).astype(e_ref.dtype)        # normalized before downcast
        acc_ref[...] = jnp.zeros_like(acc_ref)

    hw0 = pl.multiple_of(hb * hw_tile, hw_tile)
    e_slc = e_ref[:, pl.ds(hw0, hw_tile)]                 # (K, THW), small
    f = feats_ref[0]                                      # (TC, THW), native/bf16
    # Big feats tile is the lane-contracted LHS -> no per-step XLU transpose of
    # the large operand; the MXU accumulates in f32.
    acc_ref[...] += jax.lax.dot_general(
        f, e_slc,
        dimension_numbers=(((1,), (1,)), ((), ())),
        preferred_element_type=jnp.float32,
    )

    @pl.when(hb == pl.num_programs(2) - 1)
    def _():
        out_ref[0] = acc_ref[...].astype(out_ref.dtype)


def _round_up(x, m):
    return ((x + m - 1) // m) * m


def _sublane_pad(rows, itemsize):
    # Sub-32-bit dtypes pack along sublanes: pad rows to 8 (f32) / 16 (bf16) / 32 (i8).
    return _round_up(rows, max(8, 32 // int(itemsize)))


def _vmem_capacity_bytes():
    try:
        return int(pltpu.get_tpu_info().vmem_capacity_bytes)
    except Exception:
        return 64 * 1024 * 1024   # conservative: fits every TPU generation


def _pick_tiles(c, hw, k, comp_isz, probs_isz, out_isz, usable_bytes):
    """Pick (c_tile, hw_tile) for the streamed feats block.

    Preference: no tiling -> full C + HW tile (multiple of 128 dividing HW)
    -> full HW + C tile (multiple of 128).  The HW tile must divide HW exactly
    (contraction axis: padded garbage is not maskable); partial C tiles are
    safe (out-of-bounds output columns are dropped on writeback).
    """
    hw_pad = _round_up(hw, 128)
    k_lane = _round_up(k, 128)
    # VMEM costs that do not shrink with the feats tile (output/acc bounded by full C).
    fixed = (2 * _sublane_pad(k, probs_isz) * hw_pad * probs_isz   # probs double buffer
             + _sublane_pad(k, comp_isz) * hw_pad * comp_isz       # softmax cache
             + 2 * _sublane_pad(c, out_isz) * k_lane * out_isz     # output double buffer
             + _round_up(c, 8) * k_lane * 4)                       # f32 accumulator
    per_buf = max((usable_bytes - fixed) // 2, 128 * 128 * comp_isz)

    if _sublane_pad(c, comp_isz) * hw_pad * comp_isz <= per_buf:
        return c, hw                                   # whole image per step
    # Full C, tile HW.
    t = min((per_buf // (_sublane_pad(c, comp_isz) * comp_isz)) // 128 * 128, hw)
    while t >= 128:
        if hw % t == 0:
            return c, t
        t -= 128
    # Fall back: full HW, tile C (partial last block allowed).
    c_tile = max((per_buf // (hw_pad * comp_isz)) // 128 * 128, 128)
    return min(c_tile, c), hw


def spatial_gather(feats, probs, scale=1, compute_dtype=jnp.bfloat16,
                   c_tile=None, hw_tile=None):
    """feats: (N, C, H, W), probs: (N, K, H, W) -> (N, C, K, 1)."""
    n, c, h, w = feats.shape
    _, k, hp, wp = probs.shape
    assert (h, w) == (hp, wp), "feats and probs must share the spatial shape"
    hw = h * w

    out_dtype = feats.dtype
    if compute_dtype is None:
        compute_dtype = feats.dtype
    compute_dtype = jnp.dtype(compute_dtype)

    comp_isz = compute_dtype.itemsize
    probs_isz = jnp.dtype(probs.dtype).itemsize
    out_isz = jnp.dtype(out_dtype).itemsize

    vmem_cap = _vmem_capacity_bytes()
    usable = int(vmem_cap * 0.75)          # headroom for Mosaic internal scratch

    auto_c, auto_hw = _pick_tiles(c, hw, k, comp_isz, probs_isz, out_isz, usable)
    if c_tile is None:
        c_tile = auto_c
    if hw_tile is None:
        hw_tile = auto_hw
    assert c_tile == c or c_tile % 128 == 0, \
        "c_tile must equal C or be a multiple of 128"
    assert hw % hw_tile == 0 and (hw_tile == hw or hw_tile % 128 == 0), \
        "hw_tile must divide H*W and be a multiple of 128 (or the full H*W)"

    nc = pl.cdiv(c, c_tile)
    nhw = hw // hw_tile

    # feats (dominant stream) in the compute dtype; probs kept as-is (small,
    # softmax math runs in f32 inside the kernel regardless).
    feats_f = feats.reshape(n, c, hw).astype(compute_dtype)
    probs_f = probs.reshape(n, k, hw)

    # Explicit, generation-aware VMEM request for the chosen tiling.
    hw_pad = _round_up(hw, 128)
    hwt_pad = _round_up(hw_tile, 128)
    k_lane = _round_up(k, 128)
    vmem_bytes = (
        2 * _sublane_pad(k, probs_isz) * hw_pad * probs_isz          # probs double buffer
        + 2 * _sublane_pad(c_tile, comp_isz) * hwt_pad * comp_isz    # feats double buffer
        + 2 * _sublane_pad(c_tile, out_isz) * k_lane * out_isz       # output double buffer
        + _sublane_pad(k, comp_isz) * hw_pad * comp_isz              # softmax cache scratch
        + _round_up(c_tile, 8) * k_lane * 4                          # f32 accumulator scratch
    )
    vmem_limit = max(32 * 1024 * 1024,
                     min(int(vmem_bytes * 1.25) + (1 << 20), vmem_cap))

    cost = pl.CostEstimate(
        flops=2 * n * c * k * hw,
        transcendentals=n * nc * k * hw,
        bytes_accessed=n * (k * hw * probs_isz
                            + c * hw * comp_isz
                            + c * k * out_isz),
    )

    out_ck = pl.pallas_call(
        partial(_spatial_gather_kernel, scale=float(scale), hw_tile=hw_tile),
        out_shape=jax.ShapeDtypeStruct((n, c, k), out_dtype),
        grid_spec=pltpu.PrefetchScalarGridSpec(
            num_scalar_prefetch=0,
            grid=(n, nc, nhw),
            in_specs=[
                # probs block index constant across C/HW axes -> one DMA per image
                pl.BlockSpec((1, k, hw), lambda b, cb, hb: (b, 0, 0)),
                pl.BlockSpec((1, c_tile, hw_tile), lambda b, cb, hb: (b, cb, hb)),
            ],
            # output block constant across the HW (reduction) axis -> resident,
            # written back once per (image, C-tile)
            out_specs=pl.BlockSpec((1, c_tile, k), lambda b, cb, hb: (b, cb, 0)),
            scratch_shapes=[
                pltpu.VMEM((k, hw), compute_dtype),     # normalized softmax cache
                pltpu.VMEM((c_tile, k), jnp.float32),   # matmul accumulator
            ],
        ),
        compiler_params=pltpu.CompilerParams(
            # HW is the reduction axis (accumulator + per-tile softmax cache
            # require in-order revisits); batch and C are independent and can
            # be sharded across v7x's two TensorCores.
            dimension_semantics=("parallel", "parallel", "arbitrary"),
            vmem_limit_bytes=vmem_limit,
        ),
        cost_estimate=cost,
    )(probs_f, feats_f)

    # Kernel already emits the module's (N, C, K) layout; just add the unit dim.
    return out_ck[..., None]


def _reference(feats, probs, scale=1):
    n, c, h, w = feats.shape
    k = probs.shape[1]
    p = jax.nn.softmax(scale * probs.reshape(n, k, h * w).astype(jnp.float32), axis=-1)
    f = feats.reshape(n, c, h * w).astype(jnp.float32).transpose(0, 2, 1)
    return jnp.matmul(p, f).transpose(0, 2, 1)[..., None]


if __name__ == "__main__":
    key = jax.random.PRNGKey(0)
    k1, k2, k3, k4, k5, k6 = jax.random.split(key, 6)

    # Test 1: small shapes, default bf16 compute path, single tile, scale=1.
    N, C, K, H, W = 2, 8, 4, 16, 16
    feats = jax.random.normal(k1, (N, C, H, W), dtype=jnp.float32)
    probs = jax.random.normal(k2, (N, K, H, W), dtype=jnp.float32)
    out = jax.block_until_ready(spatial_gather(feats, probs, scale=1))
    ref = _reference(feats, probs, scale=1)
    assert out.shape == (N, C, K, 1)
    assert jnp.allclose(out, ref, atol=2e-2, rtol=2e-2)

    # Test 2: f32 compute path, C and HW both tiled (grid (1,2,2)), non-unit
    # scale -> exercises accumulator init/finalize and per-C-tile softmax rebuild.
    N2, C2, K2, H2, W2 = 1, 256, 5, 16, 16
    feats2 = jax.random.normal(k3, (N2, C2, H2, W2), dtype=jnp.float32)
    probs2 = jax.random.normal(k4, (N2, K2, H2, W2), dtype=jnp.float32)
    out2 = jax.block_until_ready(
        spatial_gather(feats2, probs2, scale=2, compute_dtype=None,
                       c_tile=128, hw_tile=128))
    ref2 = _reference(feats2, probs2, scale=2)
    assert out2.shape == (N2, C2, K2, 1)
    assert jnp.allclose(out2, ref2, atol=2e-3, rtol=2e-3)

    # Test 3: bf16 compute with HW tiling only (full-C tile, grid (1,1,4)).
    N3, C3, K3, H3, W3 = 1, 128, 4, 16, 32
    feats3 = jax.random.normal(k5, (N3, C3, H3, W3), dtype=jnp.float32)
    probs3 = jax.random.normal(k6, (N3, K3, H3, W3), dtype=jnp.float32)
    out3 = jax.block_until_ready(spatial_gather(feats3, probs3, scale=1, hw_tile=128))
    ref3 = _reference(feats3, probs3, scale=1)
    assert out3.shape == (N3, C3, K3, 1)
    assert jnp.allclose(out3, ref3, atol=2e-2, rtol=2e-2)

    print("KERNEL_OK")
</pallas_src>

<mosaic_0001>
module attributes {stable_mosaic.version = 11 : i64} {
  func.func @_spatial_gather_kernel(%arg0: i32, %arg1: i32, %arg2: i32, %arg3: memref<1x4x256xf32, #tpu.memory_space<vmem>>, %arg4: memref<1x8x256xbf16, #tpu.memory_space<vmem>>, %arg5: memref<1x8x4xf32, #tpu.memory_space<vmem>>, %arg6: memref<4x256xbf16, #tpu.memory_space<vmem>>, %arg7: memref<8x4xf32, #tpu.memory_space<vmem>>) attributes {dimension_semantics = [#tpu.dimension_semantics<parallel>, #tpu.dimension_semantics<parallel>, #tpu.dimension_semantics<arbitrary>], iteration_bounds = array<i64: 2, 1, 1>, scalar_prefetch = 0 : i64, scratch_operands = 2 : i64, tpu.core_type = #tpu.core_type<tc>, window_params = [{transform_indices = @transform_0, window_bounds = array<i64: 1, 4, 256>}, {transform_indices = @transform_1, window_bounds = array<i64: 1, 8, 256>}, {transform_indices = @transform_2, window_bounds = array<i64: 1, 8, 4>}]} {
    %c0_i32 = arith.constant 0 : i32
    %0 = arith.cmpi eq, %arg2, %c0_i32 : i32
    %1 = arith.extui %0 : i1 to i32
    %c0_i32_0 = arith.constant 0 : i32
    %2 = arith.cmpi ne, %1, %c0_i32_0 : i32
    scf.if %2 {
      %c0_10 = arith.constant 0 : index
      %c0_11 = arith.constant 0 : index
      %c0_12 = arith.constant 0 : index
      %16 = vector.load %arg3[%c0_10, %c0_11, %c0_12] : memref<1x4x256xf32, #tpu.memory_space<vmem>>, vector<1x4x256xf32>
      %17 = vector.shape_cast %16 : vector<1x4x256xf32> to vector<4x256xf32>
      %cst_13 = arith.constant dense<0xFF800000> : vector<4xf32>
      %18 = vector.multi_reduction <maximumf>, %17, %cst_13 [1] : vector<4x256xf32> to vector<4xf32>
      %19 = vector.shape_cast %18 : vector<4xf32> to vector<4x1xf32>
      %20 = vector.broadcast %19 : vector<4x1xf32> to vector<4x256xf32>
      %21 = arith.subf %17, %20 : vector<4x256xf32>
      %22 = math.exp %21 : vector<4x256xf32>
      %cst_14 = arith.constant dense<0.000000e+00> : vector<4xf32>
      %23 = vector.multi_reduction <add>, %22, %cst_14 [1] : vector<4x256xf32> to vector<4xf32>
      %24 = vector.shape_cast %23 : vector<4xf32> to vector<4x1xf32>
      %cst_15 = arith.constant 1.000000e+00 : f32
      %25 = vector.broadcast %cst_15 : f32 to vector<4x1xf32>
      %26 = arith.divf %25, %24 : vector<4x1xf32>
      %27 = vector.broadcast %26 : vector<4x1xf32> to vector<4x256xf32>
      %28 = arith.mulf %22, %27 : vector<4x256xf32>
      %29 = arith.truncf %28 : vector<4x256xf32> to vector<4x256xbf16>
      %c0_16 = arith.constant 0 : index
      %c0_17 = arith.constant 0 : index
      %30 = vector.load %arg6[%c0_16, %c0_17] : memref<4x256xbf16, #tpu.memory_space<vmem>>, vector<4x256xbf16>
      tpu.vector_store %arg6[%c0_16, %c0_17], %29 {strides = array<i32>} : memref<4x256xbf16, #tpu.memory_space<vmem>>, vector<4x256xbf16>,
      %cst_18 = arith.constant 0.000000e+00 : f32
      %31 = vector.broadcast %cst_18 : f32 to vector<8x4xf32>
      %c0_19 = arith.constant 0 : index
      %c0_20 = arith.constant 0 : index
      %32 = vector.load %arg7[%c0_19, %c0_20] : memref<8x4xf32, #tpu.memory_space<vmem>>, vector<8x4xf32>
      tpu.vector_store %arg7[%c0_19, %c0_20], %31 {strides = array<i32>} : memref<8x4xf32, #tpu.memory_space<vmem>>, vector<8x4xf32>,
    } else {
    }
    %c256_i32 = arith.constant 256 : i32
    %3 = arith.muli %arg2, %c256_i32 : i32
    %4 = tpu.assume_multiple %3, 256 : i32
    %c0 = arith.constant 0 : index
    %5 = arith.index_cast %4 : i32 to index
    %6 = vector.load %arg6[%c0, %5] : memref<4x256xbf16, #tpu.memory_space<vmem>>, vector<4x256xbf16>
    %c0_1 = arith.constant 0 : index
    %c0_2 = arith.constant 0 : index
    %c0_3 = arith.constant 0 : index
    %7 = vector.load %arg4[%c0_1, %c0_2, %c0_3] : memref<1x8x256xbf16, #tpu.memory_space<vmem>>, vector<1x8x256xbf16>
    %8 = vector.shape_cast %7 : vector<1x8x256xbf16> to vector<8x256xbf16>
    %c0_4 = arith.constant 0 : index
    %c0_5 = arith.constant 0 : index
    %9 = vector.load %arg7[%c0_4, %c0_5] : memref<8x4xf32, #tpu.memory_space<vmem>>, vector<8x4xf32>
    %cst = arith.constant dense<0.000000e+00> : vector<8x4xf32>
    %10 = tpu.matmul %8, %6, %cst {dimension_numbers = #tpu.dot_dimension_numbers<[1], [1], [0], [0], [0, 0, 1, 0], [], []>} : vector<8x256xbf16>, vector<4x256xbf16>, vector<8x4xf32> -> vector<8x4xf32>
    %11 = arith.addf %9, %10 : vector<8x4xf32>
    %c0_6 = arith.constant 0 : index
    %c0_7 = arith.constant 0 : index
    %12 = vector.load %arg7[%c0_6, %c0_7] : memref<8x4xf32, #tpu.memory_space<vmem>>, vector<8x4xf32>
    tpu.vector_store %arg7[%c0_6, %c0_7], %11 {strides = array<i32>} : memref<8x4xf32, #tpu.memory_space<vmem>>, vector<8x4xf32>,
    %c0_i32_8 = arith.constant 0 : i32
    %13 = arith.cmpi eq, %arg2, %c0_i32_8 : i32
    %14 = arith.extui %13 : i1 to i32
    %c0_i32_9 = arith.constant 0 : i32
    %15 = arith.cmpi ne, %14, %c0_i32_9 : i32
    scf.if %15 {
      %c0_10 = arith.constant 0 : index
      %c0_11 = arith.constant 0 : index
      %16 = vector.load %arg7[%c0_10, %c0_11] : memref<8x4xf32, #tpu.memory_space<vmem>>, vector<8x4xf32>
      %c0_12 = arith.constant 0 : index
      %c0_13 = arith.constant 0 : index
      %c0_14 = arith.constant 0 : index
      %17 = vector.load %arg5[%c0_12, %c0_13, %c0_14] : memref<1x8x4xf32, #tpu.memory_space<vmem>>, vector<1x8x4xf32>
      %18 = vector.shape_cast %17 : vector<1x8x4xf32> to vector<8x4xf32>
      %19 = vector.shape_cast %16 : vector<8x4xf32> to vector<1x8x4xf32>
      tpu.vector_store %arg5[%c0_12, %c0_13, %c0_14], %19 {strides = array<i32>} : memref<1x8x4xf32, #tpu.memory_space<vmem>>, vector<1x8x4xf32>,
    } else {
    }
    return
  }
  func.func @transform_0(%arg0: i32, %arg1: i32, %arg2: i32) -> (i32, i32, i32) {
    %c0_i32 = arith.constant 0 : i32
    %c0_i32_0 = arith.constant 0 : i32
    %c0_i32_1 = arith.constant 0 : i32
    return %arg0, %c0_i32, %c0_i32_0 : i32, i32, i32
  }
  func.func @transform_1(%arg0: i32, %arg1: i32, %arg2: i32) -> (i32, i32, i32) {
    %c0_i32 = arith.constant 0 : i32
    return %arg0, %arg1, %arg2 : i32, i32, i32
  }
  func.func @transform_2(%arg0: i32, %arg1: i32, %arg2: i32) -> (i32, i32, i32) {
    %c0_i32 = arith.constant 0 : i32
    %c0_i32_0 = arith.constant 0 : i32
    return %arg0, %arg1, %c0_i32 : i32, i32, i32
  }
}

</mosaic_0001>

<llo_original>
// kernel: tpu_custom_call.1
$region0: #{tpu_custom_call.1}
  #allocation0 [shape = 'u32[]', space=smem, size = 0x4, offset = 0x4, fixed_abs, tag = 'smem constant byte address 0x4 - core index']
  #allocation1 [shape = 'u32[144,128]{1,0:T(1,128)}', space=vmem, size = 0x12000, scoped, tag = 'internal scratch']
  #allocation2 [shape = 'bf16[4,256]{1,0:T(4,128)(2,1)}', space=vmem, size = 0x800, scoped, tag = 'scratch operand']
  #allocation3 [shape = 'f32[8,4]{1,0:T(8,128)}', space=vmem, size = 0x1000, scoped, tag = 'scratch operand']
  %s0 = inlined_call_operand.hbm [shape: f32[2,4,256], index: 0, kind: input, shape index: {}]
  %s1 = inlined_call_operand.hbm [shape: bf16[2,8,256], index: 1, kind: input, shape index: {}]
  %s2 = inlined_call_operand.vmem [shape: f32[2,8,4], index: 2, kind: output, shape index: {}]
  %s3 = sld [smem:[#allocation0]]
  $region57: #{tpu_custom_call.1} parent=0
    _
  %s5 = ssub.s32 1, %s3
  %s6 = scalar_select 0, %s5, %s3
  $region1: #{tpu_custom_call.1} parent=0
    #allocation4 [shape = 'u8[8192]{0}', space=vmem, size = 0x2000, scoped, tag = 'input window, operand 0']
    #allocation5 [shape = 's32[2]{0}', space=sflag, size = 0x8, scoped, tag = 'scoped memory for tpu_custom_call.1']
    #allocation6 [shape = 'u8[8192]{0}', space=vmem, size = 0x2000, scoped, tag = 'input window, operand 1']
    #allocation7 [shape = 's32[2]{0}', space=sflag, size = 0x8, scoped, tag = 'scoped memory for tpu_custom_call.1']
    %7 = vsyncpa [#allocation5], 0
    %s8 = scalar_lea.sflag [#allocation5], 1
    %9 = vsyncpa %s8, 0
    %10 = vsyncpa [#allocation7], 0
    %s11 = scalar_lea.sflag [#allocation7], 1
    %12 = vsyncpa %s11, 0
    loop: start=0, step=1, limit=4
    $region2: #{tpu_custom_call.1} parent=1 // loop_pre_header
      _
    $region3: #{tpu_custom_call.1} parent=1 // loop_header
      %s14 = sphi 0, %s18
      %p15 = scmp.ge.s32.totalorder %s14, 4
      %s21 = sphi 0, %s40
      %s22 = sphi 0, %s36
      %s23 = sphi 0, %s32
      %s24 = sphi 0, %s21
      %s25 = sphi 0, %s22
      %s26 = sphi 0, %s23
      %s27 = sphi 0, %s24
      %s28 = sphi 0, %s25
      %s29 = sphi 0, %s26
      %s43 = sphi 0, %s45
      %s46 = sphi 0, %s43
      %s47 = sphi 0, %s46
      %s63 = sphi 0, %s47
      %s73 = sphi 0, %s75
      %s76 = sphi 0, %s73
      %s77 = sphi 0, %s76
      %s93 = sphi 0, %s77
      %s101 = sphi 0, %s103
      %s104 = sphi 0, %s101
      %s105 = sphi 0, %s104
      %s121 = sphi 0, %s105
    $region4: #{tpu_custom_call.1} parent=1 // loop_header_branch
      %17 = sbr.rel (%p15) target = $region8
    $region5: #{tpu_custom_call.1} parent=1 // loop_body
      %s19 = ssub.s32 %s14, 1
      %s20 = ssub.s32 %s14, 2
      %s30 = sadd.s32 1, %s23
      %p31 = scmp.ge.s32.totalorder %s30, 1
      %s32 = scalar_select %p31, 0, %s30
      %s33 = sadd.s32 1, %s22
      %s34 = scalar_select %p31, %s33, %s22
      %p35 = scmp.ge.s32.totalorder %s34, 1
      %s36 = scalar_select %p35, 0, %s34
      %s37 = sadd.s32 1, %s21
      %s38 = scalar_select %p35, %s37, %s21
      %p39 = scmp.ge.s32.totalorder %s38, 2
      %s40 = scalar_select %p39, 0, %s38
      %s41 = ssub.s32 %s21, %s40
      %p42 = scmp.eq.s32.totalorder %s41, 0
      %s44 = sadd.s32 %s43, 1
      %s45 = scalar_select %p42, %s43, %s44
      %p48 = pneg %p42
      %p49 = scmp.eq.s32.totalorder %s14, 1
      %p50 = por %p48, %p49
      %p51 = scmp.ne.s32.totalorder %s43, %s46
      %p52 = scmp.eq.s32.totalorder %s14, 0
      %p53 = por %p51, %p52
      %p54 = scmp.ne.s32.totalorder %s43, %s46
      %p55 = scmp.eq.s32.totalorder %s19, 1
      %p56 = por %p54, %p55
      %p57 = scmp.ne.s32.totalorder %s46, %s47
      %p58 = scmp.eq.s32.totalorder %s19, 0
      %p59 = por %p57, %p58
      %p60 = scmp.ne.s32.totalorder %s46, %s47
      %p61 = scmp.eq.s32.totalorder %s20, 1
      %p62 = por %p60, %p61
      %p64 = scmp.ne.s32.totalorder %s47, %s63
      %p65 = scmp.eq.s32.totalorder %s20, 0
      %p66 = por %p64, %p65
      %s67 = ssub.s32 %s21, %s40
      %s68 = ssub.s32 %s22, %s36
      %s69 = sor.u32 %s67, %s68
      %s70 = ssub.s32 %s23, %s32
      %s71 = sor.u32 %s69, %s70
      %p72 = scmp.eq.s32.totalorder %s71, 0
      %s74 = sadd.s32 %s73, 1
      %s75 = scalar_select %p72, %s73, %s74
      %p78 = pneg %p72
      %p79 = scmp.eq.s32.totalorder %s14, 1
      %p80 = por %p78, %p79
      %p81 = scmp.ne.s32.totalorder %s73, %s76
      %p82 = scmp.eq.s32.totalorder %s14, 0
      %p83 = por %p81, %p82
      %p84 = scmp.ne.s32.totalorder %s73, %s76
      %p85 = scmp.eq.s32.totalorder %s19, 1
      %p86 = por %p84, %p85
      %p87 = scmp.ne.s32.totalorder %s76, %s77
      %p88 = scmp.eq.s32.totalorder %s19, 0
      %p89 = por %p87, %p88
      %p90 = scmp.ne.s32.totalorder %s76, %s77
      %p91 = scmp.eq.s32.totalorder %s20, 1
      %p92 = por %p90, %p91
      %p94 = scmp.ne.s32.totalorder %s77, %s93
      %p95 = scmp.eq.s32.totalorder %s20, 0
      %p96 = por %p94, %p95
      %s97 = ssub.s32 %s21, %s40
      %s98 = ssub.s32 %s22, %s36
      %s99 = sor.u32 %s97, %s98
      %p100 = scmp.eq.s32.totalorder %s99, 0
      %s102 = sadd.s32 %s101, 1
      %s103 = scalar_select %p100, %s101, %s102
      %p106 = pneg %p100
      %p107 = scmp.eq.s32.totalorder %s14, 1
      %p108 = por %p106, %p107
      %p109 = scmp.ne.s32.totalorder %s101, %s104
      %p110 = scmp.eq.s32.totalorder %s14, 0
      %p111 = por %p109, %p110
      %p112 = scmp.ne.s32.totalorder %s101, %s104
      %p113 = scmp.eq.s32.totalorder %s19, 1
      %p114 = por %p112, %p113
      %p115 = scmp.ne.s32.totalorder %s104, %s105
      %p116 = scmp.eq.s32.totalorder %s19, 0
      %p117 = por %p115, %p116
      %p118 = scmp.ne.s32.totalorder %s104, %s105
      %p119 = scmp.eq.s32.totalorder %s20, 1
      %p120 = por %p118, %p119
      %p122 = scmp.ne.s32.totalorder %s105, %s121
      %p123 = scmp.eq.s32.totalorder %s20, 0
      %p124 = por %p122, %p123
      %p125 = scmp.le.s32.totalorder 1, %s14
      %p126 = scmp.lt.s32.totalorder %s14, 3
      %p127 = pnand %p125, %p126
      %p128 = pneg %p127
      // Predicated region
      $region9: #{tpu_custom_call.1} parent=5 // pred_check
        _
      $region10: #{tpu_custom_call.1} parent=5 // pred_check_branch
        %130 = sbr.rel (%p127) target = $region12
      $region11: #{tpu_custom_call.1} parent=5 // pred_region
        %s131 = ssub.s32 %s14, 1
      $region12: #{tpu_custom_call.1} parent=5 // pred_fallthru
        _
      %p132 = scmp.lt.s32.totalorder %s14, 2
      // Predicated region
      $region13: #{tpu_custom_call.1} parent=5 // pred_check
        %p133 = pneg %p132
      $region14: #{tpu_custom_call.1} parent=5 // pred_check_branch
        %135 = sbr.rel (%p133) target = $region16
      $region15: #{tpu_custom_call.1} parent=5 // pred_region
        // Predicated region
        $region17: #{tpu_custom_call.1} parent=15 // pred_check
          %p136 = pneg %p53
        $region18: #{tpu_custom_call.1} parent=15 // pred_check_branch
          %138 = sbr.rel (%p136) target = $region20
        $region19: #{tpu_custom_call.1} parent=15 // pred_region
          %s139 = sand.u32 %s43, 1
          %s140 = scalar_lea.sflag [#allocation5], %s139
          %s141 = sand.u32 %s43, 1
          %s142 = smul.addr %s141, 8
          %s143 = scalar_lea.vmem [#allocation4], %s142
          %s145 = ssub.s32 128, 128
          %146 = vsyncadd %s140, %s145
          %s147 = smul.addr %s21, 2
          %s148 = smul.addr %s147, 64
          %s149 = scalar_lea.hbm %s0, %s148
          %s151 = sshll.u32 %s143, 4
          %s152 = int_to_ptr.vmem [resolvable:$true] %s151
          %154 = dma.hbm_to_vmem [thread:$0]  %s149, 128, %s152, %s140
        $region20: #{tpu_custom_call.1} parent=15 // pred_fallthru
          _
        // Predicated region
        $region21: #{tpu_custom_call.1} parent=15 // pred_check
          %p155 = pneg %p83
        $region22: #{tpu_custom_call.1} parent=15 // pred_check_branch
          %157 = sbr.rel (%p155) target = $region24
        $region23: #{tpu_custom_call.1} parent=15 // pred_region
          %s158 = sand.u32 %s73, 1
          %s159 = scalar_lea.sflag [#allocation7], %s158
          %s160 = sand.u32 %s73, 1
          %s161 = smul.addr %s160, 8
          %s162 = scalar_lea.vmem [#allocation6], %s161
          %s163 = smul.u32 2, %s23
          %s165 = ssub.s32 128, 128
          %166 = vsyncadd %s159, %s165
          %s167 = smul.addr %s22, 2
          %s168 = sadd.s32 %s163, %s167
          %s169 = smul.addr %s21, 2
          %s170 = sadd.s32 %s168, %s169
          %s171 = smul.addr %s170, 64
          %s172 = scalar_lea.hbm %s1, %s171
          %s174 = sshll.u32 %s162, 4
          %s175 = int_to_ptr.vmem [resolvable:$true] %s174
          %177 = dma.hbm_to_vmem [thread:$0]  %s172, 128, %s175, %s159
        $region24: #{tpu_custom_call.1} parent=15 // pred_fallthru
          _
      $region16: #{tpu_custom_call.1} parent=5 // pred_fallthru
        _
      %p178 = scmp.le.s32.totalorder 1, %s14
      %p179 = scmp.lt.s32.totalorder %s14, 3
      %p180 = pnand %p178, %p179
      %p181 = pneg %p180
      // Predicated region
      $region25: #{tpu_custom_call.1} parent=5 // pred_check
        _
      $region26: #{tpu_custom_call.1} parent=5 // pred_check_branch
        %183 = sbr.rel (%p180) target = $region28
      $region27: #{tpu_custom_call.1} parent=5 // pred_region
        %s184 = ssub.s32 %s14, 1
        %s185 = sand.u32 %s46, 1
        %s186 = scalar_lea.sflag [#allocation5], %s185
        %s187 = sand.u32 %s46, 1
        %s188 = smul.addr %s187, 8
        %s189 = scalar_lea.vmem [#allocation4], %s188
        // Predicated region
        $region29: #{tpu_custom_call.1} parent=27 // pred_check
          %p190 = pneg %p59
        $region30: #{tpu_custom_call.1} parent=27 // pred_check_branch
          %192 = sbr.rel (%p190) target = $region32
        $region31: #{tpu_custom_call.1} parent=27 // pred_region
          %193 = dma.done %s186, 128
        $region32: #{tpu_custom_call.1} parent=27 // pred_fallthru
          _
        %s194 = sand.u32 %s76, 1
        %s195 = scalar_lea.sflag [#allocation7], %s194
        %s196 = sand.u32 %s76, 1
        %s197 = smul.addr %s196, 8
        %s198 = scalar_lea.vmem [#allocation6], %s197
        // Predicated region
        $region33: #{tpu_custom_call.1} parent=27 // pred_check
          %p199 = pneg %p89
        $region34: #{tpu_custom_call.1} parent=27 // pred_check_branch
          %201 = sbr.rel (%p199) target = $region36
        $region35: #{tpu_custom_call.1} parent=27 // pred_region
          %202 = dma.done %s195, 128
        $region36: #{tpu_custom_call.1} parent=27 // pred_fallthru
          _
        %s203 = sand.u32 %s46, 1
        %s204 = scalar_lea.sflag [#allocation5], %s203
        %s205 = sand.u32 %s46, 1
        %s206 = smul.addr %s205, 8
        %s207 = scalar_lea.vmem [#allocation4], %s206
        %p208 = pneg %p59
        %p209 = pneg %p56
        %s210 = sand.u32 %s76, 1
        %s211 = scalar_lea.sflag [#allocation7], %s210
        %s212 = sand.u32 %s76, 1
        %s213 = smul.addr %s212, 8
        %s214 = scalar_lea.vmem [#allocation6], %s213
        %p215 = pneg %p89
        %p216 = pneg %p86
        %p217 = pneg %p117
        %p218 = pneg %p114
        %p219 = scmp.lt.s32.totalorder %s24, 1
        %s220 = scalar_select %p219, %s24, 1
        %p221 = scmp.lt.s32.totalorder %s25, 0
        %s222 = scalar_select %p221, %s25, 0
        %s223 = sadd.s32 %s222, %s220
        %s224 = smul.addr %s223, 8
        %s225 = scalar_lea.vmem %s2, %s224
        %s226 = smul.u32 2, %s26
        %p227 = scmp.lt.s32.totalorder %s24, 1
        %s228 = scalar_select %p227, %s24, 1
        %p229 = scmp.lt.s32.totalorder %s25, 0
        %s230 = scalar_select %p229, %s25, 0
        %s231 = sadd.s32 %s230, %s228
        %s232 = smul.addr %s231, 8
        %s233 = scalar_lea.vmem %s2, %s232
        %p235 = scmp.eq.s32.totalorder %s26, 0
        // Predicated region
        $region37: #{tpu_custom_call.1} parent=27 // pred_check
          %p236 = pneg %p235
        $region38: #{tpu_custom_call.1} parent=27 // pred_check_branch
          %238 = sbr.rel (%p236) target = $region40
        $region39: #{tpu_custom_call.1} parent=27 // pred_region
          %v239 = vld [vmem:[%s189] sm:$0xff]
          %v241 = vcombine.high %v239, %v239
          %vm243 = vcmask 1043456
          %v244 = vsel %vm243, %v239, -inf
          %v245 = vsel %vm243, %v241, -inf
          %v246 = vmax.f32 %v244, %v245
          %247 = vmax.xlane.f32.xlu0 %v246
          %v248 = vpop.xlane.xlu0 %247
          %v251 = vunpack.c.l.s4 839922192
          %v252 = vunpack.c.0.s8 %v251
          %v253 = vlaneseq
          %v254 = vshrl.u32 %v253, 7
          %v255 = vsub.s32 %v252, %v254
          %v256 = vrot.slane %v248, %v255
          %v258 = vsub.f32 %v239, %v256
          %v259 = vmul.f32 %v258, 1.442695
          %v260 = vpow.pop %v259
          %v262 = vcombine.high %v260, %v260
          %v264 = vsel %vm243, %v260, 0.0
          %v265 = vsel %vm243, %v262, 0.0
          %v266 = vadd.f32 %v264, %v265
          %267 = vadd.xlane.f32.xlu0 %v266
          %v268 = vpop.xlane.xlu0 %267
          %v269 = vrcp.pop %v268
          %v270 = vmul.f32 1.0, %v269
          %v273 = vunpack.c.l.s4 839922192
          %v274 = vunpack.c.0.s8 %v273
          %v275 = vlaneseq
          %v276 = vshrl.u32 %v275, 7
          %v277 = vsub.s32 %v274, %v276
          %v278 = vrot.slane %v270, %v277
          %v280 = vmul.f32 %v260, %v278
          %v282 = vcombine.high %v280, %v280
          %v284 = vpack.c.bf16 %v280, %v280
          %v285 = vpack.c.bf16 %v282, %v282
          %v288 = vcombine.low %v284, %v285
          %v290 = vunpack.c.l.s4 1983009808
          %v291 = vunpack.c.0.s8 %v290
          %v292 = vlaneseq
          %v293 = vshrl.u32 %v292, 7
          %v294 = vsub.s32 %v291, %v293
          %v295 = vrot.slane %v288, %v294
          %297 = vst [vmem:[#allocation2] sm:$0xf] %v295
          %vm298 = vcmask 31744
          %299 = vst.msk [vmem:[#allocation3] sm:$0xff] %vm298, 0.0
        $region40: #{tpu_custom_call.1} parent=27 // pred_fallthru
          _
        %s300 = smul.u32 %s26, 256
        %s301 = sshra.s32 %s300, 7
        %s302 = sand.u32 %s300, 127
        %s303 = smul.addr %s301, 2
        %s304 = scalar_lea.vmem [#allocation2], %s303
        %v305 = vld [vmem:[%s304] sm:$0xf]
        %v306 = vld [vmem:[%s198] sm:$0xff]
        %v307 = vld [vmem:[#allocation3] sm:$0xff]
        %v309 = vunpack.c.l.b16 %v306
        %v310 = vunpack.c.h.b16 %v306
        %v311 = vpack.c.b16 %v309, %v309
        %v312 = vpack.c.b16 %v310, %v310
        %v317 = vunpack.c.l.s4 1983009808
        %v318 = vunpack.c.0.s8 %v317
        %v319 = vlaneseq
        %v320 = vshrl.u32 %v319, 7
        %v321 = vsub.s32 %v318, %v320
        %v322 = vrot.slane %v305, %v321
        %v323 = vcombine.high %v322, %v322
        %326 = vmatprep.subr.bf16.mxu0 %v323
        %327 = vmatpush1.bf16.xpose.msra.mxu0 %v322
        %328 = vmatprep.subr.bf16.mxu0 0
        %329 = vmatpush1.bf16.xpose.msra.mxu0 0
        %330 = vmatprep.subr.bf16.mxu0 0
        %331 = vmatpush1.bf16.xpose.msra.mxu0 0
        %332 = vmatprep.subr.bf16.mxu0 0
        %333 = vmatpush1.bf16.xpose.msra.mxu0 0
        %334 = vmatprep.subr.bf16.mxu0 0
        %335 = vmatpush1.bf16.xpose.msra.mxu0 0
        %336 = vmatprep.subr.bf16.mxu0 0
        %337 = vmatpush1.bf16.xpose.msra.mxu0 0
        %338 = vmatprep.subr.bf16.mxu0 0
        %339 = vmatpush1.bf16.xpose.msra.mxu0 0
        %340 = vmatprep.subr.bf16.mxu0 0
        %341 = vmatpush1.bf16.xpose.msra.mxu0 0
        %342 = vmatprep.subr.bf16.mxu0 0
        %343 = vmatpush1.bf16.xpose.msra.mxu0 0
        %344 = vmatprep.subr.bf16.mxu0 0
        %345 = vmatpush1.bf16.xpose.msra.mxu0 0
        %346 = vmatprep.subr.bf16.mxu0 0
        %347 = vmatpush1.bf16.xpose.msra.mxu0 0
        %348 = vmatprep.subr.bf16.mxu0 0
        %349 = vmatpush1.bf16.xpose.msra.mxu0 0
        %350 = vmatprep.subr.bf16.mxu0 0
        %351 = vmatpush1.bf16.xpose.msra.mxu0 0
        %352 = vmatprep.subr.bf16.mxu0 0
        %353 = vmatpush1.bf16.xpose.msra.mxu0 0
        %354 = vmatprep.subr.bf16.mxu0 0
        %355 = vmatpush1.bf16.xpose.msra.mxu0 0
        %356 = vmatprep.subr.bf16.mxu0 0
        %357 = vmatpush1.bf16.xpose.msra.mxu0 0
        %358 = vmatprep.mubr.bf16.mxu0 %v312
        %359 = vmatmul.mubr.bf16.gmra.mrb[0].mxu0 %v311
        %v360 = vpop.f32.mrb[0].mxu0
        %v361 = vadd.f32 0.0, %v360
        %v362 = vpop.f32.mrb[0].mxu0
        %v363 = vpop.f32.mrb[0].mxu0
        %v364 = vpop.f32.mrb[0].mxu0
        %365 = vdwg.mxu0
        %v366 = vadd.f32 %v307, %v361
        %vm367 = vcmask 31744
        %368 = vst.msk [vmem:[#allocation3] sm:$0xff] %vm367, %v366
        // Predicated region
        $region41: #{tpu_custom_call.1} parent=27 // pred_check
          %p369 = pneg %p235
        $region42: #{tpu_custom_call.1} parent=27 // pred_check_branch
          %371 = sbr.rel (%p369) target = $region44
        $region43: #{tpu_custom_call.1} parent=27 // pred_region
          %v372 = vld [vmem:[#allocation3] sm:$0xff]
          %373 = vst.msk [vmem:[%s233] sm:$0xff] %vm367, %v372
        $region44: #{tpu_custom_call.1} parent=27 // pred_fallthru
          _
        %p374 = scmp.lt.s32.totalorder %s24, 1
        %s375 = scalar_select %p374, %s24, 1
        %p376 = scmp.lt.s32.totalorder %s25, 0
        %s377 = scalar_select %p376, %s25, 0
        %s378 = sadd.s32 %s377, %s375
        %s379 = smul.addr %s378, 8
        %s380 = scalar_lea.vmem %s2, %s379
        // Predicated region
        $region45: #{tpu_custom_call.1} parent=27 // pred_check
          %p381 = pneg %p114
        $region46: #{tpu_custom_call.1} parent=27 // pred_check_branch
          %383 = sbr.rel (%p381) target = $region48
        $region47: #{tpu_custom_call.1} parent=27 // pred_region
          _
        $region48: #{tpu_custom_call.1} parent=27 // pred_fallthru
          _
      $region28: #{tpu_custom_call.1} parent=5 // pred_fallthru
        _
      %p384 = scmp.le.s32.totalorder 2, %s14
      // Predicated region
      $region49: #{tpu_custom_call.1} parent=5 // pred_check
        %p385 = pneg %p384
      $region50: #{tpu_custom_call.1} parent=5 // pred_check_branch
        %387 = sbr.rel (%p385) target = $region52
      $region51: #{tpu_custom_call.1} parent=5 // pred_region
        %s388 = ssub.s32 %s14, 2
        // Predicated region
        $region53: #{tpu_custom_call.1} parent=51 // pred_check
          %p389 = pneg %p120
        $region54: #{tpu_custom_call.1} parent=51 // pred_check_branch
          %391 = sbr.rel (%p389) target = $region56
        $region55: #{tpu_custom_call.1} parent=51 // pred_region
          %p392 = scmp.lt.s32.totalorder %s27, 1
          %s393 = scalar_select %p392, %s27, 1
          %p394 = scmp.lt.s32.totalorder %s28, 0
          %s395 = scalar_select %p394, %s28, 0
          %s396 = sadd.s32 %s395, %s393
          %s397 = smul.addr %s396, 8
          %s398 = scalar_lea.vmem %s2, %s397
        $region56: #{tpu_custom_call.1} parent=51 // pred_fallthru
          _
      $region52: #{tpu_custom_call.1} parent=5 // pred_fallthru
        _
    $region6: #{tpu_custom_call.1} parent=1 // loop_footer
      %s18 = sadd.s32 1, %s14
    $region7: #{tpu_custom_call.1} parent=1 // loop_footer_branch
      %13 = sbr.rel target = $region3
    $region8: #{tpu_custom_call.1} parent=1 // loop_exit
      _
    %399 = vsyncpa [#allocation5], 1
    %s400 = scalar_lea.sflag [#allocation5], 1
    %401 = vsyncpa %s400, 1
    %402 = vsyncpa [#allocation7], 1
    %s403 = scalar_lea.sflag [#allocation7], 1
    %404 = vsyncpa %s403, 1

</llo_original>
